<compile_context>
chip_gen: v5e
topology: v5e:2x2
jax: 0.10.0
libtpu: 0.0.40
codegen_flags: <defaults>
</compile_context>

<pallas_src>
import functools

import jax
import jax.numpy as jnp
from jax import lax
from jax.experimental import pallas as pl
from jax.experimental.pallas import tpu as pltpu


# ---------------------------------------------------------------------------
# Kernel
# ---------------------------------------------------------------------------
def _attn_agg_kernel(emb_ref, len_ref,
                     aw_ref, ab_ref,
                     w1_ref, b1_ref,
                     w2_ref, b2_ref,
                     w3_ref, b3_ref,
                     out_ref):
    emb = emb_ref[...].astype(jnp.float32)                 # (TB, S, E)
    TB, S, E = emb.shape

    # ---- attention logits: Linear(E, 1) as VPU multiply + lane reduce ----
    aw = aw_ref[...].reshape(1, 1, E)
    logits = jnp.sum(emb * aw, axis=-1) + ab_ref[0, 0]     # (TB, S) f32

    # ---- mask padded positions (finite large-negative; length >= 1 assumed) ----
    pos = lax.broadcasted_iota(jnp.int32, (TB, S), 1)       # (TB, S)
    mask = pos < len_ref[...]                               # (TB, 1) broadcast
    logits = jnp.where(mask, logits, jnp.float32(-1e30))

    # ---- softmax over the sequence axis (EUP approx reciprocal for denom) ----
    m = jnp.max(logits, axis=1, keepdims=True)
    p = jnp.where(mask, jnp.exp(logits - m), 0.0)
    denom = jnp.sum(p, axis=1, keepdims=True)
    attn = p * pl.reciprocal(denom, approx=True)            # (TB, S)

    # ---- weighted sum over S: VPU multiply + sublane (XLU) reduce ----
    attn_out = jnp.sum(attn[:, :, None] * emb, axis=1)      # (TB, E) f32

    # ---- MLP head: fc1 -> (dropout=id) -> relu -> fc2 -> (dropout=id) -> relu -> fc3
    x = jnp.dot(attn_out, w1_ref[...],
                preferred_element_type=jnp.float32) + b1_ref[...]
    x = jnp.maximum(x, 0.0)
    x = jnp.dot(x, w2_ref[...],
                preferred_element_type=jnp.float32) + b2_ref[...]
    x = jnp.maximum(x, 0.0)
    preds = jnp.dot(x, w3_ref[...],
                    preferred_element_type=jnp.float32) + b3_ref[...]

    out_ref[...] = preds.astype(out_ref.dtype)


# ---------------------------------------------------------------------------
# Tiling / VMEM budgeting
# ---------------------------------------------------------------------------
def _round_up(x, m):
    return ((x + m - 1) // m) * m


@functools.lru_cache(maxsize=1)
def _vmem_capacity_bytes():
    try:
        return int(pltpu.get_tpu_info().vmem_capacity_bytes)
    except Exception:
        return 64 * 1024 * 1024          # v7x-safe fallback (smallest VMEM)


def _pick_tiling(B, S, E, HP, OP, itemsize):
    """Pick the batch tile TB and a matching vmem_limit_bytes.

    Accounting uses the tiled VMEM layout (S sublane-padded to 8, E lane-padded
    to 128) for the double-buffered stream, plus headroom for the in-kernel f32
    temporaries, the resident MLP weights and the double-buffered output block.
    """
    vmem_cap = _vmem_capacity_bytes()
    # Working-set target: <= ~48 MiB even on 128 MiB parts; ~60% of a 64 MiB
    # v7x TensorCore's VMEM.
    total_budget = min(48 << 20, int(vmem_cap * 0.6))

    sp, ep = _round_up(S, 8), _round_up(E, 128)
    per_row = 2 * sp * ep * itemsize        # double-buffered embedding stream tile
    per_row += 2 * sp * ep * 4              # in-kernel f32 temporaries over (S, E)
    per_row += 6 * _round_up(S, 128) * 4    # logits / p / attn / max / denom rows
    per_row += (2 * HP + OP) * 4            # MLP intermediates
    per_row += 2 * OP * 4                   # double-buffered output block

    ek = _round_up(E, 8)
    resident = 2 * 4 * (8 * ep                       # attn weight row
                        + ek * HP + 8 * HP           # w1, b1
                        + HP * HP + 8 * HP           # w2, b2
                        + HP * OP + 8 * OP)          # w3, b3

    budget = max(total_budget - resident, 1 << 20)
    tb = max(1, budget // per_row)
    if tb >= B:
        tb = B
    else:
        tb = (tb // 8) * 8                  # (8,128) layout rule for (TB, *) blocks
        if tb == 0:
            tb = min(B, 8)                  # layout floor; vmem_limit accounts for it

    # v7x has 2 TensorCores: keep >= 2 blocks on the "parallel" batch axis so
    # both cores get work (near-zero cost on 1-TC v5e/v6e).
    if B >= 16:
        tb = min(tb, _round_up((B + 1) // 2, 8))

    est = tb * per_row + resident + (4 << 20)
    vmem_limit = min(vmem_cap - (8 << 20), max(32 << 20, est + (4 << 20)))
    return int(tb), int(vmem_limit)


# ---------------------------------------------------------------------------
# Wrapper
# ---------------------------------------------------------------------------
@functools.partial(jax.jit, static_argnames=("TB", "HP", "OP", "vmem_limit"))
def _attn_agg_fwd(embeddings, lengths, params, *, TB, HP, OP, vmem_limit):
    B, S, E = embeddings.shape
    H = params["w1"].shape[1]
    O = params["w3"].shape[1]

    # Lane-dense padding of the tiny MLP weights only (VMEM-resident); the
    # (B, S, E) embedding stream is NOT padded or copied.
    w1p = jnp.pad(params["w1"], ((0, 0), (0, HP - H)))
    b1p = jnp.pad(params["b1"], ((0, 0), (0, HP - H)))
    w2p = jnp.pad(params["w2"], ((0, HP - H), (0, HP - H)))
    b2p = jnp.pad(params["b2"], ((0, 0), (0, HP - H)))
    w3p = jnp.pad(params["w3"], ((0, HP - H), (0, OP - O)))
    b3p = jnp.pad(params["b3"], ((0, 0), (0, OP - O)))
    aw_row = params["aw"].reshape(1, E)                     # (1, E) lane vector
    ab = params["ab"].reshape(1, 1)                         # SMEM scalar
    len2 = lengths.reshape(B, 1).astype(jnp.int32)

    nb = pl.cdiv(B, TB)                                     # partial last block OK

    out_padded = pl.pallas_call(
        _attn_agg_kernel,
        out_shape=jax.ShapeDtypeStruct((B, OP), jnp.float32),
        grid=(nb,),
        in_specs=[
            # streamed per batch tile (software-pipelined HBM->VMEM DMA)
            pl.BlockSpec((TB, S, E), lambda b: (b, 0, 0)),
            pl.BlockSpec((TB, 1), lambda b: (b, 0)),
            # resident small weights (constant index_map -> loaded once)
            pl.BlockSpec((1, E), lambda b: (0, 0)),
            pl.BlockSpec((1, 1), lambda b: (0, 0),
                         memory_space=pltpu.MemorySpace.SMEM),
            pl.BlockSpec((E, HP), lambda b: (0, 0)),
            pl.BlockSpec((1, HP), lambda b: (0, 0)),
            pl.BlockSpec((HP, HP), lambda b: (0, 0)),
            pl.BlockSpec((1, HP), lambda b: (0, 0)),
            pl.BlockSpec((HP, OP), lambda b: (0, 0)),
            pl.BlockSpec((1, OP), lambda b: (0, 0)),
        ],
        out_specs=pl.BlockSpec((TB, OP), lambda b: (b, 0)),
        compiler_params=pltpu.CompilerParams(
            dimension_semantics=("parallel",),
            vmem_limit_bytes=vmem_limit),
    )(embeddings, len2, aw_row, ab, w1p, b1p, w2p, b2p, w3p, b3p)

    return out_padded[:, :O]


def attention_aggregator(embeddings, lengths, params):
    """embeddings: (B, S, E) f32, lengths: (B,) int, params: dict of weights."""
    B, S, E = embeddings.shape
    HP = _round_up(params["w1"].shape[1], 128)
    OP = _round_up(params["w3"].shape[1], 128)
    TB, vmem_limit = _pick_tiling(B, S, E, HP, OP, embeddings.dtype.itemsize)
    return _attn_agg_fwd(embeddings, lengths, params,
                         TB=TB, HP=HP, OP=OP, vmem_limit=vmem_limit)


# ---------------------------------------------------------------------------
# Reference, params, test
# ---------------------------------------------------------------------------
def _reference(embeddings, lengths, params):
    """Pure-JAX reference of the PyTorch forward (eval mode)."""
    B, S, E = embeddings.shape
    logits = embeddings @ params["aw"] + params["ab"][0, 0]   # (B, S, 1)
    logits = logits[..., 0]
    mask = jnp.arange(S)[None, :] < lengths[:, None]
    logits = jnp.where(mask, logits, -jnp.inf)
    attn = jax.nn.softmax(logits, axis=1)
    attn_out = jnp.einsum("bse,bs->be", embeddings, attn)
    x = jnp.maximum(attn_out @ params["w1"] + params["b1"], 0.0)
    x = jnp.maximum(x @ params["w2"] + params["b2"], 0.0)
    return x @ params["w3"] + params["b3"]


def _init_params(key, embedding_dim, hidden_dim, output_dim):
    ks = jax.random.split(key, 8)
    def lin(kw, kb, fan_in, fan_out):
        bound = 1.0 / jnp.sqrt(fan_in)
        w = jax.random.uniform(kw, (fan_in, fan_out), jnp.float32, -bound, bound)
        b = jax.random.uniform(kb, (1, fan_out), jnp.float32, -bound, bound)
        return w, b
    aw, ab = lin(ks[0], ks[1], embedding_dim, 1)
    w1, b1 = lin(ks[2], ks[3], embedding_dim, hidden_dim)
    w2, b2 = lin(ks[4], ks[5], hidden_dim, hidden_dim)
    w3, b3 = lin(ks[6], ks[7], hidden_dim, output_dim)
    return dict(aw=aw, ab=ab, w1=w1, b1=b1, w2=w2, b2=b2, w3=w3, b3=b3)


if __name__ == "__main__":
    B, S, E, H, O = 2, 8, 32, 32, 4

    key = jax.random.PRNGKey(0)
    k_emb, k_params = jax.random.split(key)
    embeddings = jax.random.normal(k_emb, (B, S, E), jnp.float32)
    lengths = jnp.array([8, 5], dtype=jnp.int32)      # variable sequence lengths
    params = _init_params(k_params, E, H, O)

    out = attention_aggregator(embeddings, lengths, params)
    out = jax.block_until_ready(out)

    ref = _reference(embeddings, lengths, params)
    assert out.shape == (B, O)
    # Tolerance covers the EUP approximate-reciprocal softmax normalization.
    assert jnp.allclose(out, ref, atol=5e-3, rtol=5e-3), (out, ref)

    print("KERNEL_OK")
</pallas_src>

<mosaic_0001>
module attributes {stable_mosaic.version = 11 : i64} {
  func.func @_attn_agg_kernel(%arg0: i32, %arg1: memref<2x8x32xf32, #tpu.memory_space<vmem>>, %arg2: memref<2x1xi32, #tpu.memory_space<vmem>>, %arg3: memref<1x32xf32, #tpu.memory_space<vmem>>, %arg4: memref<1x1xf32, #tpu.memory_space<smem>>, %arg5: memref<32x128xf32, #tpu.memory_space<vmem>>, %arg6: memref<1x128xf32, #tpu.memory_space<vmem>>, %arg7: memref<128x128xf32, #tpu.memory_space<vmem>>, %arg8: memref<1x128xf32, #tpu.memory_space<vmem>>, %arg9: memref<128x128xf32, #tpu.memory_space<vmem>>, %arg10: memref<1x128xf32, #tpu.memory_space<vmem>>, %arg11: memref<2x128xf32, #tpu.memory_space<vmem>>) attributes {dimension_semantics = [#tpu.dimension_semantics<parallel>], iteration_bounds = array<i64: 1>, scalar_prefetch = 0 : i64, scratch_operands = 0 : i64, tpu.core_type = #tpu.core_type<tc>, window_params = [{transform_indices = @transform_0, window_bounds = array<i64: 2, 8, 32>}, {transform_indices = @transform_1, window_bounds = array<i64: 2, 1>}, {pipeline_mode = #tpu.pipeline_mode<synchronous>, transform_indices = @transform_2, window_bounds = array<i64: 1, 32>}, {transform_indices = @transform_3, window_bounds = array<i64: 1, 1>}, {pipeline_mode = #tpu.pipeline_mode<synchronous>, transform_indices = @transform_4, window_bounds = array<i64: 32, 128>}, {pipeline_mode = #tpu.pipeline_mode<synchronous>, transform_indices = @transform_5, window_bounds = array<i64: 1, 128>}, {pipeline_mode = #tpu.pipeline_mode<synchronous>, transform_indices = @transform_6, window_bounds = array<i64: 128, 128>}, {pipeline_mode = #tpu.pipeline_mode<synchronous>, transform_indices = @transform_7, window_bounds = array<i64: 1, 128>}, {pipeline_mode = #tpu.pipeline_mode<synchronous>, transform_indices = @transform_8, window_bounds = array<i64: 128, 128>}, {pipeline_mode = #tpu.pipeline_mode<synchronous>, transform_indices = @transform_9, window_bounds = array<i64: 1, 128>}, {transform_indices = @transform_10, window_bounds = array<i64: 2, 128>}]} {
    %c0 = arith.constant 0 : index
    %c0_0 = arith.constant 0 : index
    %c0_1 = arith.constant 0 : index
    %0 = vector.load %arg1[%c0, %c0_0, %c0_1] : memref<2x8x32xf32, #tpu.memory_space<vmem>>, vector<2x8x32xf32>
    %c0_2 = arith.constant 0 : index
    %c0_3 = arith.constant 0 : index
    %1 = vector.load %arg3[%c0_2, %c0_3] : memref<1x32xf32, #tpu.memory_space<vmem>>, vector<1x32xf32>
    %2 = vector.shape_cast %1 : vector<1x32xf32> to vector<1x1x32xf32>
    %3 = vector.broadcast %2 : vector<1x1x32xf32> to vector<2x8x32xf32>
    %4 = arith.mulf %0, %3 : vector<2x8x32xf32>
    %cst = arith.constant dense<0.000000e+00> : vector<2x8xf32>
    %5 = vector.multi_reduction <add>, %4, %cst [2] : vector<2x8x32xf32> to vector<2x8xf32>
    %c0_4 = arith.constant 0 : index
    %c0_5 = arith.constant 0 : index
    %6 = memref.load %arg4[%c0_4, %c0_5] : memref<1x1xf32, #tpu.memory_space<smem>>
    %7 = vector.broadcast %6 : f32 to vector<2x8xf32>
    %8 = arith.addf %5, %7 : vector<2x8xf32>
    %9 = tpu.iota {dimensions = array<i32: 1>} : vector<2x8xi32>
    %c0_6 = arith.constant 0 : index
    %c0_7 = arith.constant 0 : index
    %10 = vector.load %arg2[%c0_6, %c0_7] : memref<2x1xi32, #tpu.memory_space<vmem>>, vector<2x1xi32>
    %11 = vector.broadcast %10 : vector<2x1xi32> to vector<2x8xi32>
    %12 = arith.cmpi slt, %9, %11 : vector<2x8xi32>
    %cst_8 = arith.constant -1.000000e+30 : f32
    %13 = vector.broadcast %cst_8 : f32 to vector<2x8xf32>
    %14 = arith.select %12, %8, %13 : vector<2x8xi1>, vector<2x8xf32>
    %cst_9 = arith.constant dense<0xFF800000> : vector<2xf32>
    %15 = vector.multi_reduction <maximumf>, %14, %cst_9 [1] : vector<2x8xf32> to vector<2xf32>
    %16 = vector.shape_cast %15 : vector<2xf32> to vector<2x1xf32>
    %17 = vector.broadcast %16 : vector<2x1xf32> to vector<2x8xf32>
    %18 = arith.subf %14, %17 : vector<2x8xf32>
    %19 = math.exp %18 : vector<2x8xf32>
    %cst_10 = arith.constant 0.000000e+00 : f32
    %20 = vector.broadcast %cst_10 : f32 to vector<2x8xf32>
    %21 = arith.select %12, %19, %20 : vector<2x8xi1>, vector<2x8xf32>
    %cst_11 = arith.constant dense<0.000000e+00> : vector<2xf32>
    %22 = vector.multi_reduction <add>, %21, %cst_11 [1] : vector<2x8xf32> to vector<2xf32>
    %23 = vector.shape_cast %22 : vector<2xf32> to vector<2x1xf32>
    %24 = tpu.reciprocal %23 {approx = true} : vector<2x1xf32> -> vector<2x1xf32>
    %25 = vector.broadcast %24 : vector<2x1xf32> to vector<2x8xf32>
    %26 = arith.mulf %21, %25 : vector<2x8xf32>
    %27 = vector.shape_cast %26 : vector<2x8xf32> to vector<2x8x1xf32>
    %28 = vector.broadcast %27 : vector<2x8x1xf32> to vector<2x8x32xf32>
    %29 = arith.mulf %28, %0 : vector<2x8x32xf32>
    %cst_12 = arith.constant dense<0.000000e+00> : vector<2x32xf32>
    %30 = vector.multi_reduction <add>, %29, %cst_12 [1] : vector<2x8x32xf32> to vector<2x32xf32>
    %c0_13 = arith.constant 0 : index
    %c0_14 = arith.constant 0 : index
    %31 = vector.load %arg5[%c0_13, %c0_14] : memref<32x128xf32, #tpu.memory_space<vmem>>, vector<32x128xf32>
    %cst_15 = arith.constant dense<0.000000e+00> : vector<2x128xf32>
    %32 = tpu.matmul %30, %31, %cst_15 {dimension_numbers = #tpu.dot_dimension_numbers<[1], [0], [0], [1], [0, 0, 1, 1], [], []>} : vector<2x32xf32>, vector<32x128xf32>, vector<2x128xf32> -> vector<2x128xf32>
    %c0_16 = arith.constant 0 : index
    %c0_17 = arith.constant 0 : index
    %33 = vector.load %arg6[%c0_16, %c0_17] : memref<1x128xf32, #tpu.memory_space<vmem>>, vector<1x128xf32>
    %34 = vector.broadcast %33 : vector<1x128xf32> to vector<2x128xf32>
    %35 = arith.addf %32, %34 : vector<2x128xf32>
    %cst_18 = arith.constant 0.000000e+00 : f32
    %36 = vector.broadcast %cst_18 : f32 to vector<2x128xf32>
    %37 = arith.maximumf %35, %36 : vector<2x128xf32>
    %c0_19 = arith.constant 0 : index
    %c0_20 = arith.constant 0 : index
    %38 = vector.load %arg7[%c0_19, %c0_20] : memref<128x128xf32, #tpu.memory_space<vmem>>, vector<128x128xf32>
    %cst_21 = arith.constant dense<0.000000e+00> : vector<2x128xf32>
    %39 = tpu.matmul %37, %38, %cst_21 {dimension_numbers = #tpu.dot_dimension_numbers<[1], [0], [0], [1], [0, 0, 1, 1], [], []>} : vector<2x128xf32>, vector<128x128xf32>, vector<2x128xf32> -> vector<2x128xf32>
    %c0_22 = arith.constant 0 : index
    %c0_23 = arith.constant 0 : index
    %40 = vector.load %arg8[%c0_22, %c0_23] : memref<1x128xf32, #tpu.memory_space<vmem>>, vector<1x128xf32>
    %41 = vector.broadcast %40 : vector<1x128xf32> to vector<2x128xf32>
    %42 = arith.addf %39, %41 : vector<2x128xf32>
    %cst_24 = arith.constant 0.000000e+00 : f32
    %43 = vector.broadcast %cst_24 : f32 to vector<2x128xf32>
    %44 = arith.maximumf %42, %43 : vector<2x128xf32>
    %c0_25 = arith.constant 0 : index
    %c0_26 = arith.constant 0 : index
    %45 = vector.load %arg9[%c0_25, %c0_26] : memref<128x128xf32, #tpu.memory_space<vmem>>, vector<128x128xf32>
    %cst_27 = arith.constant dense<0.000000e+00> : vector<2x128xf32>
    %46 = tpu.matmul %44, %45, %cst_27 {dimension_numbers = #tpu.dot_dimension_numbers<[1], [0], [0], [1], [0, 0, 1, 1], [], []>} : vector<2x128xf32>, vector<128x128xf32>, vector<2x128xf32> -> vector<2x128xf32>
    %c0_28 = arith.constant 0 : index
    %c0_29 = arith.constant 0 : index
    %47 = vector.load %arg10[%c0_28, %c0_29] : memref<1x128xf32, #tpu.memory_space<vmem>>, vector<1x128xf32>
    %48 = vector.broadcast %47 : vector<1x128xf32> to vector<2x128xf32>
    %49 = arith.addf %46, %48 : vector<2x128xf32>
    %c0_30 = arith.constant 0 : index
    %c0_31 = arith.constant 0 : index
    %50 = vector.load %arg11[%c0_30, %c0_31] : memref<2x128xf32, #tpu.memory_space<vmem>>, vector<2x128xf32>
    tpu.vector_store %arg11[%c0_30, %c0_31], %49 {strides = array<i32>} : memref<2x128xf32, #tpu.memory_space<vmem>>, vector<2x128xf32>,
    return
  }
  func.func @transform_0(%arg0: i32) -> (i32, i32, i32) {
    %c0_i32 = arith.constant 0 : i32
    %c0_i32_0 = arith.constant 0 : i32
    %c0_i32_1 = arith.constant 0 : i32
    return %arg0, %c0_i32, %c0_i32_0 : i32, i32, i32
  }
  func.func @transform_1(%arg0: i32) -> (i32, i32) {
    %c0_i32 = arith.constant 0 : i32
    %c0_i32_0 = arith.constant 0 : i32
    return %arg0, %c0_i32 : i32, i32
  }
  func.func @transform_2(%arg0: i32) -> (i32, i32) {
    %c0_i32 = arith.constant 0 : i32
    %c0_i32_0 = arith.constant 0 : i32
    %c0_i32_1 = arith.constant 0 : i32
    return %c0_i32, %c0_i32_0 : i32, i32
  }
  func.func @transform_3(%arg0: i32) -> (i32, i32) {
    %c0_i32 = arith.constant 0 : i32
    %c0_i32_0 = arith.constant 0 : i32
    %c0_i32_1 = arith.constant 0 : i32
    return %c0_i32, %c0_i32_0 : i32, i32
  }
  func.func @transform_4(%arg0: i32) -> (i32, i32) {
    %c0_i32 = arith.constant 0 : i32
    %c0_i32_0 = arith.constant 0 : i32
    %c0_i32_1 = arith.constant 0 : i32
    return %c0_i32, %c0_i32_0 : i32, i32
  }
  func.func @transform_5(%arg0: i32) -> (i32, i32) {
    %c0_i32 = arith.constant 0 : i32
    %c0_i32_0 = arith.constant 0 : i32
    %c0_i32_1 = arith.constant 0 : i32
    return %c0_i32, %c0_i32_0 : i32, i32
  }
  func.func @transform_6(%arg0: i32) -> (i32, i32) {
    %c0_i32 = arith.constant 0 : i32
    %c0_i32_0 = arith.constant 0 : i32
    %c0_i32_1 = arith.constant 0 : i32
    return %c0_i32, %c0_i32_0 : i32, i32
  }
  func.func @transform_7(%arg0: i32) -> (i32, i32) {
    %c0_i32 = arith.constant 0 : i32
    %c0_i32_0 = arith.constant 0 : i32
    %c0_i32_1 = arith.constant 0 : i32
    return %c0_i32, %c0_i32_0 : i32, i32
  }
  func.func @transform_8(%arg0: i32) -> (i32, i32) {
    %c0_i32 = arith.constant 0 : i32
    %c0_i32_0 = arith.constant 0 : i32
    %c0_i32_1 = arith.constant 0 : i32
    return %c0_i32, %c0_i32_0 : i32, i32
  }
  func.func @transform_9(%arg0: i32) -> (i32, i32) {
    %c0_i32 = arith.constant 0 : i32
    %c0_i32_0 = arith.constant 0 : i32
    %c0_i32_1 = arith.constant 0 : i32
    return %c0_i32, %c0_i32_0 : i32, i32
  }
  func.func @transform_10(%arg0: i32) -> (i32, i32) {
    %c0_i32 = arith.constant 0 : i32
    %c0_i32_0 = arith.constant 0 : i32
    return %arg0, %c0_i32 : i32, i32
  }
}

</mosaic_0001>

<llo_original>
// kernel: _attn_agg_fwd.1
$region0: #{_attn_agg_fwd.1}
  #allocation0 [shape = 'u32[]', space=smem, size = 0x4, offset = 0x4, fixed_abs, tag = 'smem constant byte address 0x4 - core index']
  #allocation1 [shape = 'u32[72,128]{1,0:T(1,128)}', space=vmem, size = 0x9000, scoped, tag = 'internal scratch']
  #allocation2 [shape = 'f32[1,1]{1,0:T(1,128)S(6)}', space=smem, size = 0x200, scoped, tag = 'scoped memory for _attn_agg_fwd.1']
  %s0 = inlined_call_operand.vmem [shape: f32[2,8,32], index: 0, kind: input, shape index: {}]
  %s1 = inlined_call_operand.vmem [shape: s32[2,1], index: 1, kind: input, shape index: {}]
  %s2 = inlined_call_operand.vmem [shape: f32[1,32], index: 2, kind: input, shape index: {}]
  %s3 = inlined_call_operand.<no memory space> [shape: f32[1,1], index: 3, kind: input, shape index: {}]
  %s4 = inlined_call_operand.vmem [shape: f32[32,128], index: 4, kind: input, shape index: {}]
  %s5 = inlined_call_operand.vmem [shape: f32[1,128], index: 5, kind: input, shape index: {}]
  %s6 = inlined_call_operand.vmem [shape: f32[128,128], index: 6, kind: input, shape index: {}]
  %s7 = inlined_call_operand.vmem [shape: f32[1,128], index: 7, kind: input, shape index: {}]
  %s8 = inlined_call_operand.vmem [shape: f32[128,128], index: 8, kind: input, shape index: {}]
  %s9 = inlined_call_operand.vmem [shape: f32[1,128], index: 9, kind: input, shape index: {}]
  %s10 = inlined_call_operand.hbm [shape: f32[2,128], index: 10, kind: output, shape index: {}]
  %s11 = sld [smem:[#allocation0]]
  $region50: #{_attn_agg_fwd.1} parent=0
    _
  %s13 = ssub.s32 1, %s11
  %s14 = scalar_select 0, %s13, %s11
  %15 = sst [smem:[#allocation2]] %s3
  $region1: #{_attn_agg_fwd.1} parent=0
    #allocation3 [shape = 'u8[1024]{0}', space=vmem, size = 0x400, scoped, tag = 'output window, operand 0, single buffered']
    #allocation4 [shape = 's32[1]{0}', space=sflag, size = 0x4, scoped, tag = 'scoped memory for _attn_agg_fwd.1']
    %16 = vsyncpa [#allocation4], 0
    // Predicated region
    $region2: #{_attn_agg_fwd.1} parent=1 // pred_check
      _
    $region3: #{_attn_agg_fwd.1} parent=1 // pred_check_branch
      %18 = sbr.rel (0) target = $region5
    $region4: #{_attn_agg_fwd.1} parent=1 // pred_region
      _
    $region5: #{_attn_agg_fwd.1} parent=1 // pred_fallthru
      _
    // Predicated region
    $region6: #{_attn_agg_fwd.1} parent=1 // pred_check
      _
    $region7: #{_attn_agg_fwd.1} parent=1 // pred_check_branch
      %20 = sbr.rel (0) target = $region9
    $region8: #{_attn_agg_fwd.1} parent=1 // pred_region
      _
    $region9: #{_attn_agg_fwd.1} parent=1 // pred_fallthru
      _
    // Predicated region
    $region10: #{_attn_agg_fwd.1} parent=1 // pred_check
      _
    $region11: #{_attn_agg_fwd.1} parent=1 // pred_check_branch
      %22 = sbr.rel (0) target = $region13
    $region12: #{_attn_agg_fwd.1} parent=1 // pred_region
      _
    $region13: #{_attn_agg_fwd.1} parent=1 // pred_fallthru
      _
    // Predicated region
    $region14: #{_attn_agg_fwd.1} parent=1 // pred_check
      _
    $region15: #{_attn_agg_fwd.1} parent=1 // pred_check_branch
      %24 = sbr.rel (0) target = $region17
    $region16: #{_attn_agg_fwd.1} parent=1 // pred_region
      _
    $region17: #{_attn_agg_fwd.1} parent=1 // pred_fallthru
      _
    // Predicated region
    $region18: #{_attn_agg_fwd.1} parent=1 // pred_check
      _
    $region19: #{_attn_agg_fwd.1} parent=1 // pred_check_branch
      %26 = sbr.rel (0) target = $region21
    $region20: #{_attn_agg_fwd.1} parent=1 // pred_region
      _
    $region21: #{_attn_agg_fwd.1} parent=1 // pred_fallthru
      _
    // Predicated region
    $region22: #{_attn_agg_fwd.1} parent=1 // pred_check
      _
    $region23: #{_attn_agg_fwd.1} parent=1 // pred_check_branch
      %28 = sbr.rel (0) target = $region25
    $region24: #{_attn_agg_fwd.1} parent=1 // pred_region
      _
    $region25: #{_attn_agg_fwd.1} parent=1 // pred_fallthru
      _
    // Predicated region
    $region26: #{_attn_agg_fwd.1} parent=1 // pred_check
      _
    $region27: #{_attn_agg_fwd.1} parent=1 // pred_check_branch
      %30 = sbr.rel (0) target = $region29
    $region28: #{_attn_agg_fwd.1} parent=1 // pred_region
      _
    $region29: #{_attn_agg_fwd.1} parent=1 // pred_fallthru
      _
    // Predicated region
    $region30: #{_attn_agg_fwd.1} parent=1 // pred_check
      _
    $region31: #{_attn_agg_fwd.1} parent=1 // pred_check_branch
      %32 = sbr.rel (0) target = $region33
    $region32: #{_attn_agg_fwd.1} parent=1 // pred_region
      _
    $region33: #{_attn_agg_fwd.1} parent=1 // pred_fallthru
      _
    // Predicated region
    $region34: #{_attn_agg_fwd.1} parent=1 // pred_check
      _
    $region35: #{_attn_agg_fwd.1} parent=1 // pred_check_branch
      %34 = sbr.rel (0) target = $region37
    $region36: #{_attn_agg_fwd.1} parent=1 // pred_region
      _
    $region37: #{_attn_agg_fwd.1} parent=1 // pred_fallthru
      _
    // Predicated region
    $region38: #{_attn_agg_fwd.1} parent=1 // pred_check
      _
    $region39: #{_attn_agg_fwd.1} parent=1 // pred_check_branch
      %36 = sbr.rel (0) target = $region41
    $region40: #{_attn_agg_fwd.1} parent=1 // pred_region
      _
    $region41: #{_attn_agg_fwd.1} parent=1 // pred_fallthru
      _
    %v37 = vld [vmem:[%s0] sm:$0xff]
    %v38 = vld [vmem:[%s0 + $0x8] sm:$0xff]
    %v39 = vld [vmem:[%s2] sm:$0x1]
    %v41 = vperm.slane %v39, 0
    %v43 = vmul.f32 %v37, %v41
    %v44 = vmul.f32 %v38, %v41
    %vm45 = vcmask 261120
    %v46 = vsel %vm45, %v43, 0.0
    %47 = vadd.xlane.f32.xlu0 %v46
    %v48 = vpop.xlane.xlu0 %47
    %v49 = vsel %vm45, %v44, 0.0
    %50 = vadd.xlane.f32.xlu0 %v49
    %v51 = vpop.xlane.xlu0 %50
    %s52 = sld [smem:[#allocation2]]
    %v53 = vstv %s52
    %v54 = vadd.f32 %v48, %v53
    %v55 = vadd.f32 %v51, %v53
    %v56 = vlaneseq
    %v57 = vand.u32 %v56, 127
    %v58 = vld [vmem:[%s1] sm:$0x3]
    %59 = vset.pattern.permute.xlu0 0
    %60 = vperm.xlu0 %59, %v58
    %v61 = vpop.permute.xlu0 %60
    %vm62 = vcmp.lt.s32.totalorder %v57, %v61
    %v65 = vperm.slane %v54, %v57
    %v66 = vperm.slane %v55, %v57
    %vm67 = vcmask 1041409
    %v68 = vsel %vm67, %v66, %v65
    %v70 = vsel %vm62, %v68, -1e+30
    %vm71 = vcmask 58368
    %v72 = vsel %vm71, %v70, -inf
    %73 = vmax.xlane.f32.xlu0 %v72
    %v74 = vpop.xlane.xlu0 %73
    %v75 = vsub.f32 %v70, %v74
    %v76 = vmul.f32 %v75, 1.442695
    %v77 = vpow.pop %v76
    %v78 = vsel %vm62, %v77, 0.0
    %v79 = vsel %vm71, %v78, 0.0
    %80 = vadd.xlane.f32.xlu0 %v79
    %v81 = vpop.xlane.xlu0 %80
    %v82 = vrcp.pop %v81
    %v83 = vmul.f32 %v78, %v82
    %v84 = vperm.slane %v83, 0
    %v85 = vlaneseq
    %v86 = vshrl.u32 %v85, 7
    %88 = vset.pattern.permute.xlu0 %v86
    %89 = vperm.xlu0 %88, %v84
    %v90 = vpop.permute.xlu0 %89
    %v91 = vperm.slane %v83, 1
    %v92 = vlaneseq
    %v93 = vshrl.u32 %v92, 7
    %95 = vset.pattern.permute.xlu0 %v93
    %96 = vperm.xlu0 %95, %v91
    %v97 = vpop.permute.xlu0 %96
    %v98 = vmul.f32 %v90, %v37
    %v99 = vmul.f32 %v97, %v38
    %v100 = vsel %vm45, %v98, 0.0
    %v101 = vrot.slane %v100, 4
    %v102 = vadd.f32 %v100, %v101
    %v103 = vrot.slane %v102, 2
    %v104 = vadd.f32 %v102, %v103
    %v105 = vrot.slane %v104, 1
    %v106 = vadd.f32 %v104, %v105
    %v107 = vsel %vm45, %v99, 0.0
    %v108 = vrot.slane %v107, 4
    %v109 = vadd.f32 %v107, %v108
    %v110 = vrot.slane %v109, 2
    %v111 = vadd.f32 %v109, %v110
    %v112 = vrot.slane %v111, 1
    %v113 = vadd.f32 %v111, %v112
    %v114 = vld [vmem:[%s4] sm:$0xff]
    %v115 = vld [vmem:[%s4 + $0x8] sm:$0xff]
    %v116 = vld [vmem:[%s4 + $0x10] sm:$0xff]
    %v117 = vld [vmem:[%s4 + $0x18] sm:$0xff]
    %v118 = vld [vmem:[%s5] sm:$0x1]
    %v120 = vperm.slane %v118, 0
    %v124 = vsel %vm67, %v113, %v106
    %v125 = vsel %vm45, %v124, 0
    %127 = vmatpush.msra.mxu0 0.0
    %128 = vmatpush.msra.mxu0 0.0
    %129 = vmatpush.msra.mxu0 0.0
    %130 = vmatpush.msra.mxu0 0.0
    %131 = vmatpush.msra.mxu0 0.0
    %132 = vmatpush.msra.mxu0 0.0
    %133 = vmatpush.msra.mxu0 0.0
    %134 = vmatpush.msra.mxu0 0.0
    %135 = vmatpush.msra.mxu0 0.0
    %136 = vmatpush.msra.mxu0 0.0
    %137 = vmatpush.msra.mxu0 0.0
    %138 = vmatpush.msra.mxu0 0.0
    %139 = vmatpush.msra.mxu0 %v117
    %140 = vmatpush.msra.mxu0 %v116
    %141 = vmatpush.msra.mxu0 %v115
    %142 = vmatpush.msra.mxu0 %v114
    %143 = vmatmul.f32.gmra.mxu0 %v125
    %v144 = vpop.f32.mrf.mxu0
    %v145 = vadd.f32 %v120, %v144
    %146 = vdwg.mxu0
    %v147 = vmax.f32 %v145, 0.0
    %v148 = vld [vmem:[%s6] sm:$0xff]
    %v149 = vld [vmem:[%s6 + $0x8] sm:$0xff]
    %v150 = vld [vmem:[%s6 + $0x10] sm:$0xff]
    %v151 = vld [vmem:[%s6 + $0x18] sm:$0xff]
    %v152 = vld [vmem:[%s6 + $0x20] sm:$0xff]
    %v153 = vld [vmem:[%s6 + $0x28] sm:$0xff]
    %v154 = vld [vmem:[%s6 + $0x30] sm:$0xff]
    %v155 = vld [vmem:[%s6 + $0x38] sm:$0xff]
    %v156 = vld [vmem:[%s6 + $0x40] sm:$0xff]
    %v157 = vld [vmem:[%s6 + $0x48] sm:$0xff]
    %v158 = vld [vmem:[%s6 + $0x50] sm:$0xff]
    %v159 = vld [vmem:[%s6 + $0x58] sm:$0xff]
    %v160 = vld [vmem:[%s6 + $0x60] sm:$0xff]
    %v161 = vld [vmem:[%s6 + $0x68] sm:$0xff]
    %v162 = vld [vmem:[%s6 + $0x70] sm:$0xff]
    %v163 = vld [vmem:[%s6 + $0x78] sm:$0xff]
    %v164 = vld [vmem:[%s7] sm:$0x1]
    %v166 = vperm.slane %v164, 0
    %168 = vmatpush.msra.mxu0 %v163
    %169 = vmatpush.msra.mxu0 %v162
    %170 = vmatpush.msra.mxu0 %v161
    %171 = vmatpush.msra.mxu0 %v160
    %172 = vmatpush.msra.mxu0 %v159
    %173 = vmatpush.msra.mxu0 %v158
    %174 = vmatpush.msra.mxu0 %v157
    %175 = vmatpush.msra.mxu0 %v156
    %176 = vmatpush.msra.mxu0 %v155
    %177 = vmatpush.msra.mxu0 %v154
    %178 = vmatpush.msra.mxu0 %v153
    %179 = vmatpush.msra.mxu0 %v152
    %180 = vmatpush.msra.mxu0 %v151
    %181 = vmatpush.msra.mxu0 %v150
    %182 = vmatpush.msra.mxu0 %v149
    %183 = vmatpush.msra.mxu0 %v148
    %184 = vmatmul.f32.gmra.mxu0 %v147
    %v185 = vpop.f32.mrf.mxu0
    %v186 = vadd.f32 %v166, %v185
    %187 = vdwg.mxu0
    %v188 = vmax.f32 %v186, 0.0
    %v189 = vld [vmem:[%s8] sm:$0xff]
    %v190 = vld [vmem:[%s8 + $0x8] sm:$0xff]
    %v191 = vld [vmem:[%s8 + $0x10] sm:$0xff]
    %v192 = vld [vmem:[%s8 + $0x18] sm:$0xff]
    %v193 = vld [vmem:[%s8 + $0x20] sm:$0xff]
    %v194 = vld [vmem:[%s8 + $0x28] sm:$0xff]
    %v195 = vld [vmem:[%s8 + $0x30] sm:$0xff]
    %v196 = vld [vmem:[%s8 + $0x38] sm:$0xff]
    %v197 = vld [vmem:[%s8 + $0x40] sm:$0xff]
    %v198 = vld [vmem:[%s8 + $0x48] sm:$0xff]
    %v199 = vld [vmem:[%s8 + $0x50] sm:$0xff]
    %v200 = vld [vmem:[%s8 + $0x58] sm:$0xff]
    %v201 = vld [vmem:[%s8 + $0x60] sm:$0xff]
    %v202 = vld [vmem:[%s8 + $0x68] sm:$0xff]
    %v203 = vld [vmem:[%s8 + $0x70] sm:$0xff]
    %v204 = vld [vmem:[%s8 + $0x78] sm:$0xff]
    %v205 = vld [vmem:[%s9] sm:$0x1]
    %v207 = vperm.slane %v205, 0
    %209 = vmatpush.msra.mxu0 %v204
    %210 = vmatpush.msra.mxu0 %v203
    %211 = vmatpush.msra.mxu0 %v202
    %212 = vmatpush.msra.mxu0 %v201
    %213 = vmatpush.msra.mxu0 %v200
    %214 = vmatpush.msra.mxu0 %v199
    %215 = vmatpush.msra.mxu0 %v198
    %216 = vmatpush.msra.mxu0 %v197
    %217 = vmatpush.msra.mxu0 %v196
    %218 = vmatpush.msra.mxu0 %v195
    %219 = vmatpush.msra.mxu0 %v194
    %220 = vmatpush.msra.mxu0 %v193
    %221 = vmatpush.msra.mxu0 %v192
    %222 = vmatpush.msra.mxu0 %v191
    %223 = vmatpush.msra.mxu0 %v190
    %224 = vmatpush.msra.mxu0 %v189
    %225 = vmatmul.f32.gmra.mxu0 %v188
    %v226 = vpop.f32.mrf.mxu0
    %v227 = vadd.f32 %v207, %v226
    %228 = vdwg.mxu0
    %229 = vst [vmem:[#allocation3] sm:$0x3] %v227
    // Predicated region
    $region42: #{_attn_agg_fwd.1} parent=1 // pred_check
      _
    $region43: #{_attn_agg_fwd.1} parent=1 // pred_check_branch
      %231 = sbr.rel (0) target = $region45
    $region44: #{_attn_agg_fwd.1} parent=1 // pred_region
      %233 = vsyncadd [#allocation4], 0
      %s235 = sshll.u32 [#allocation3], 4
      %s236 = int_to_ptr.vmem [resolvable:$true] %s235
      %s237 = sshll.u32 %s10, 4
      %s238 = int_to_ptr.hbm [resolvable:$true] %s237
      %240 = dma.vmem_to_hbm [thread:$0]  %s236, 32, %s238, [#allocation4]
    $region45: #{_attn_agg_fwd.1} parent=1 // pred_fallthru
      _
    // Predicated region
    $region46: #{_attn_agg_fwd.1} parent=1 // pred_check
      _
    $region47: #{_attn_agg_fwd.1} parent=1 // pred_check_branch
      %242 = sbr.rel (0) target = $region49
    $region48: #{_attn_agg_fwd.1} parent=1 // pred_region
      %244 = dma.done [#allocation4], 32
    $region49: #{_attn_agg_fwd.1} parent=1 // pred_fallthru
      _
    %245 = vsyncpa [#allocation4], 1

</llo_original>
